<compile_context>
chip_gen: v5e
topology: v5e:2x2
jax: 0.10.0
libtpu: 0.0.40
codegen_flags: <defaults>
</compile_context>

<pallas_src>
import functools

import jax
import jax.numpy as jnp
from jax.experimental import pallas as pl
from jax.experimental.pallas import tpu as pltpu


def _round_up(x, m):
    return ((x + m - 1) // m) * m


# ----------------------------------------------------------------------------
# Pallas kernel: full MLP forward + packed (logits | lse) lane-dense bf16 output
# ----------------------------------------------------------------------------
def _policy_kernel(num_layers, n_actions, *refs):
    # refs = [x, w0, b0, w1, b1, ..., w{L-1}, b{L-1}, out]
    x_ref = refs[0]
    out_ref = refs[1 + 2 * num_layers]

    h = x_ref[...]                              # bf16 (tile_b, in_dim)
    for i in range(num_layers):
        w = refs[1 + 2 * i][...]                # bf16 (in_pad_i, out_pad_i)
        b = refs[2 + 2 * i][...]                # f32  (1, out_pad_i)
        # bf16 operands on the MXU, f32 accumulation; bias add in f32 (VPU).
        h = jnp.dot(h, w, preferred_element_type=jnp.float32) + b
        if i < num_layers - 1:
            # ELU (alpha=1).  Single EUP transcendental per element: the old
            # tanh + divide form used two EUP-class ops and bound v5e's
            # f32-only EUP first.  exp(min(h,0)) - 1 == expm1(h) for h <= 0
            # up to f32 rounding, far below the kernel's bf16 tolerance.
            neg = jnp.exp(jnp.minimum(h, 0.0)) - 1.0
            h = jnp.where(h > 0.0, h, neg)
            h = h.astype(w.dtype)               # bf16 LHS for the next MXU matmul

    # h: (tile_b, out_pad) f32; lanes >= n_actions are exact zeros (zero W/b
    # columns).  Mask from one (1, out_pad) iota row, broadcast everywhere.
    valid = jax.lax.broadcasted_iota(jnp.int32, (1, h.shape[-1]), 1) < n_actions

    # Numerically-stable log-sum-exp over the real action lanes only (f32).
    hm = jnp.where(valid, h, -1e30)
    m = jnp.max(hm, axis=-1, keepdims=True)
    s = jnp.sum(jnp.where(valid, jnp.exp(hm - m), 0.0), axis=-1, keepdims=True)
    lse = jnp.log(s) + m

    # Pack: logits in lanes [0:n_actions], lse broadcast into the padded lanes.
    # Single full-width unmasked store; cast to bf16 only at the store.
    out_ref[...] = jnp.where(valid, h, lse).astype(out_ref.dtype)


# ----------------------------------------------------------------------------
# One-time parameter packing (done at init, NOT per forward call)
# ----------------------------------------------------------------------------
def pack_policy_params(weights, biases, matmul_dtype=jnp.bfloat16):
    """Pack PyTorch-layout Linear params into the TPU-friendly layout once.

    - transpose (out, in) -> (in, out)                    (no per-call transpose)
    - zero-pad every output width to a multiple of 128    (lane-dense layers);
      the final layer reserves one extra lane so the lse fits in the padding
    - weights cast to `matmul_dtype` (bf16 default) for the MXU; biases stay f32.
    Padding is exact: padded activations are ELU(0)=0 and padded rows/cols are 0.
    """
    num_layers = len(weights)
    n_actions = weights[-1].shape[0]
    layers = []
    in_pad = weights[0].shape[1]                 # never pad x's feature dim
    for i, (w, b) in enumerate(zip(weights, biases)):
        out_size, in_size = w.shape
        min_width = out_size + 1 if i == num_layers - 1 else out_size
        out_pad = _round_up(min_width, 128)
        wt = jnp.zeros((in_pad, out_pad), jnp.float32)
        wt = wt.at[:in_size, :out_size].set(jnp.asarray(w, jnp.float32).T)
        bp = jnp.zeros((1, out_pad), jnp.float32)
        bp = bp.at[0, :out_size].set(jnp.asarray(b, jnp.float32))
        layers.append((wt.astype(matmul_dtype), bp))
        in_pad = out_pad
    return {"layers": layers, "n_actions": n_actions}


# ----------------------------------------------------------------------------
# Batch tiling policy
# ----------------------------------------------------------------------------
_TILE_CAP = 2048     # rows per batch tile (512 was ~10x more conservative than needed)
_MIN_SPLIT = 256     # below this, run the whole (sublane-padded) batch as one tile


def _choose_batch_tiling(batch):
    """Returns (tile_b, batch_pad, grid_steps).

    Pads the batch to a sublane (8) multiple; for large batches guarantees
    >= 2 grid steps so dimension_semantics=("parallel",) spans both v7x
    TensorCores, and never exceeds _TILE_CAP rows per tile.  Works for any
    batch size (no power-of-two divisor requirement)."""
    batch8 = _round_up(max(batch, 1), 8)
    if batch8 < _MIN_SPLIT:
        return batch8, batch8, 1
    steps = max(2, pl.cdiv(batch8, _TILE_CAP))
    tile_b = _round_up(pl.cdiv(batch8, steps), 8)
    return tile_b, tile_b * steps, steps


# ----------------------------------------------------------------------------
# pallas_call wrapper
# ----------------------------------------------------------------------------
def policy_mlp_pallas(params, x):
    """Run the whole MLP (matmuls + ELU + masked log-sum-exp) in one kernel.

    Returns:
      logits: (B, n_actions) f32
      lse:    (B, 1) f32 log-sum-exp over actions (log_probs = logits - lse)
    """
    layers = params["layers"]
    n_actions = params["n_actions"]
    num_layers = len(layers)
    batch, in_dim = x.shape
    out_pad = layers[-1][0].shape[1]

    tile_b, batch_pad, steps = _choose_batch_tiling(batch)

    # bf16 input stream: halves the input HBM read; layer-0 MXU LHS was already
    # bf16, so exactness is unchanged.  Pad batch rows with zeros (discarded).
    x_bf16 = x.astype(jnp.bfloat16)
    if batch_pad != batch:
        x_bf16 = jnp.pad(x_bf16, ((0, batch_pad - batch), (0, 0)))

    # Advisory cost estimate + explicit VMEM sizing.
    flops = 2 * batch_pad * sum(w.shape[0] * w.shape[1] for w, _ in layers)
    transcendentals = batch_pad * sum(w.shape[1] for w, _ in layers)
    param_bytes = sum(w.size * 2 + b.size * 4 for w, b in layers)
    io_bytes = x_bf16.size * 2 + batch_pad * out_pad * 2
    cost = pl.CostEstimate(flops=flops, transcendentals=transcendentals,
                           bytes_accessed=io_bytes + param_bytes)
    act_bytes = 3 * tile_b * max(w.shape[1] for w, _ in layers) * 4
    vmem_est = (2 * (tile_b * in_dim * 2 + tile_b * out_pad * 2)
                + 2 * param_bytes + act_bytes)
    vmem_limit = int(min(max(2 * vmem_est, 16 << 20), 48 << 20))

    def run(single_buffer_weights):
        kernel_inputs = [x_bf16]
        in_specs = [pl.BlockSpec((tile_b, in_dim), lambda i: (i, 0))]
        wkw = ({"pipeline_mode": pl.Buffered(1)} if single_buffer_weights else {})
        for w, b in layers:
            kernel_inputs.append(w)
            kernel_inputs.append(b)
            # Constant index_map -> weights/biases stay VMEM-resident across
            # batch tiles; Buffered(1) skips the useless second buffer.
            in_specs.append(pl.BlockSpec(w.shape, lambda i: (0, 0), **wkw))
            in_specs.append(pl.BlockSpec(b.shape, lambda i: (0, 0), **wkw))
        return pl.pallas_call(
            functools.partial(_policy_kernel, num_layers, n_actions),
            out_shape=jax.ShapeDtypeStruct((batch_pad, out_pad), jnp.bfloat16),
            grid=(steps,),
            in_specs=in_specs,
            out_specs=pl.BlockSpec((tile_b, out_pad), lambda i: (i, 0)),
            compiler_params=pltpu.CompilerParams(
                dimension_semantics=("parallel",),   # megacore batch shard on v7x
                vmem_limit_bytes=vmem_limit),
            cost_estimate=cost,
        )(*kernel_inputs)

    try:
        packed = run(single_buffer_weights=True)
    except Exception:
        # Fallback for Pallas versions that reject pipeline_mode on pallas_call
        # BlockSpecs; double-buffering ~75 KiB of resident weights is harmless.
        packed = run(single_buffer_weights=False)

    logits = packed[:batch, :n_actions].astype(jnp.float32)
    lse = packed[:batch, n_actions:n_actions + 1].astype(jnp.float32)
    return logits, lse


# ----------------------------------------------------------------------------
# PolicyNet wrapper (parameter init + forward semantics of the nn.Module)
# ----------------------------------------------------------------------------
def init_policy_net(layer_sizes, key):
    """Deterministic init of Linear params with PyTorch shapes (out, in)."""
    weights, biases = [], []
    in_size = layer_sizes[0]
    for out_size in layer_sizes[1:]:
        key, wk, bk = jax.random.split(key, 3)
        bound = 1.0 / jnp.sqrt(jnp.float32(in_size))
        weights.append(
            jax.random.uniform(wk, (out_size, in_size), jnp.float32, -bound, bound))
        biases.append(
            jax.random.uniform(bk, (out_size,), jnp.float32, -bound, bound))
        in_size = out_size
    return weights, biases


def policy_net_forward(params, x, key=None, action_query=None, training=True):
    """Mirrors PolicyNet.forward semantics."""
    logits, lse = policy_mlp_pallas(params, x)

    if not training:
        # torch .argmax() with no dim flattens -> scalar flat index.
        # TODO(synk): confirm with module owner whether per-row argmax was intended.
        return jnp.argmax(logits)

    if action_query is None:
        action = jax.random.categorical(key, logits, axis=-1)             # (B,)
        picked = jnp.take_along_axis(logits, action[..., None], axis=-1)[..., 0]
        return action, picked - lse[..., 0]                               # (B,)
    else:
        # Categorical(logits).sample() has the batch shape of logits; check
        # against that directly instead of burning a key on a throwaway sample.
        expected_shape = logits.shape[:-1]
        assert action_query.shape == expected_shape, (
            'action_query has the wrong shape. It now has shape {} but should '
            'have shape {}'.format(tuple(action_query.shape),
                                   tuple(expected_shape)))
        picked = jnp.take_along_axis(
            logits, action_query[..., None], axis=-1)[..., 0]
        return picked - lse[..., 0]


# ----------------------------------------------------------------------------
if __name__ == "__main__":
    layer_sizes = [32, 64, 64, 6]   # obs_dim -> hidden -> hidden -> n_actions
    batch = 8

    root = jax.random.PRNGKey(0)
    pkey, xkey, skey, qkey = jax.random.split(root, 4)

    weights, biases = init_policy_net(layer_sizes, pkey)
    params = pack_policy_params(weights, biases)          # one-time packing
    x = jax.random.normal(xkey, (batch, layer_sizes[0]), jnp.float32)

    # Training mode, no action_query: (action, log_prob)
    action, log_prob = policy_net_forward(params, x, key=skey, training=True)
    jax.block_until_ready((action, log_prob))

    # Training mode with action_query: log_prob of the queried actions
    action_query = jax.random.randint(qkey, (batch,), 0, layer_sizes[-1])
    lp_query = policy_net_forward(params, x, key=skey,
                                  action_query=action_query, training=True)
    jax.block_until_ready(lp_query)

    # Eval mode: flat argmax over the whole logits tensor (torch .argmax()).
    greedy = policy_net_forward(params, x, training=False)
    jax.block_until_ready(greedy)

    # Sanity: kernel agrees with a pure-JAX f32-accum reference that uses the
    # same bf16 matmul-operand cast.  Tolerances account for the intentional
    # bf16 output store (perf choice: halves HBM writeback).
    ref = x
    for i, (w, b) in enumerate(zip(weights, biases)):
        ref = jnp.dot(ref.astype(jnp.bfloat16),
                      jnp.asarray(w).T.astype(jnp.bfloat16),
                      preferred_element_type=jnp.float32) + b
        if i < len(weights) - 1:
            ref = jnp.where(ref > 0.0, ref, jnp.expm1(ref))
    ref_logp = jax.nn.log_softmax(ref, axis=-1)

    logits_k, lse_k = policy_mlp_pallas(params, x)
    assert jnp.allclose(logits_k, ref, atol=3e-2, rtol=3e-2), \
        float(jnp.max(jnp.abs(logits_k - ref)))
    assert jnp.allclose(logits_k - lse_k, ref_logp, atol=3e-2, rtol=3e-2), \
        float(jnp.max(jnp.abs((logits_k - lse_k) - ref_logp)))
    assert jnp.allclose(
        lp_query,
        jnp.take_along_axis(ref_logp, action_query[..., None], axis=-1)[..., 0],
        atol=3e-2, rtol=3e-2)

    # Also exercise an awkward (non power-of-two, padded) batch size.
    x_big = jax.random.normal(xkey, (300, layer_sizes[0]), jnp.float32)
    lb, sb = policy_mlp_pallas(params, x_big)
    jax.block_until_ready((lb, sb))
    assert lb.shape == (300, layer_sizes[-1]) and sb.shape == (300, 1)

    print("KERNEL_OK")
</pallas_src>

<mosaic_0001>
module attributes {stable_mosaic.version = 11 : i64} {
  func.func @_policy_kernel(%arg0: i32, %arg1: memref<8x32xbf16, #tpu.memory_space<vmem>>, %arg2: memref<32x128xbf16, #tpu.memory_space<vmem>>, %arg3: memref<1x128xf32, #tpu.memory_space<vmem>>, %arg4: memref<128x128xbf16, #tpu.memory_space<vmem>>, %arg5: memref<1x128xf32, #tpu.memory_space<vmem>>, %arg6: memref<128x128xbf16, #tpu.memory_space<vmem>>, %arg7: memref<1x128xf32, #tpu.memory_space<vmem>>, %arg8: memref<8x128xbf16, #tpu.memory_space<vmem>>) attributes {dimension_semantics = [#tpu.dimension_semantics<parallel>], iteration_bounds = array<i64: 1>, scalar_prefetch = 0 : i64, scratch_operands = 0 : i64, tpu.core_type = #tpu.core_type<tc>, window_params = [{transform_indices = @transform_0, window_bounds = array<i64: 8, 32>}, {pipeline_mode = #tpu.pipeline_mode<synchronous>, transform_indices = @transform_1, window_bounds = array<i64: 32, 128>}, {pipeline_mode = #tpu.pipeline_mode<synchronous>, transform_indices = @transform_2, window_bounds = array<i64: 1, 128>}, {pipeline_mode = #tpu.pipeline_mode<synchronous>, transform_indices = @transform_3, window_bounds = array<i64: 128, 128>}, {pipeline_mode = #tpu.pipeline_mode<synchronous>, transform_indices = @transform_4, window_bounds = array<i64: 1, 128>}, {pipeline_mode = #tpu.pipeline_mode<synchronous>, transform_indices = @transform_5, window_bounds = array<i64: 128, 128>}, {pipeline_mode = #tpu.pipeline_mode<synchronous>, transform_indices = @transform_6, window_bounds = array<i64: 1, 128>}, {transform_indices = @transform_7, window_bounds = array<i64: 8, 128>}]} {
    %c0 = arith.constant 0 : index
    %c0_0 = arith.constant 0 : index
    %0 = vector.load %arg1[%c0, %c0_0] : memref<8x32xbf16, #tpu.memory_space<vmem>>, vector<8x32xbf16>
    %c0_1 = arith.constant 0 : index
    %c0_2 = arith.constant 0 : index
    %1 = vector.load %arg2[%c0_1, %c0_2] : memref<32x128xbf16, #tpu.memory_space<vmem>>, vector<32x128xbf16>
    %c0_3 = arith.constant 0 : index
    %c0_4 = arith.constant 0 : index
    %2 = vector.load %arg3[%c0_3, %c0_4] : memref<1x128xf32, #tpu.memory_space<vmem>>, vector<1x128xf32>
    %cst = arith.constant dense<0.000000e+00> : vector<8x128xf32>
    %3 = tpu.matmul %0, %1, %cst {dimension_numbers = #tpu.dot_dimension_numbers<[1], [0], [0], [1], [0, 0, 1, 1], [], []>} : vector<8x32xbf16>, vector<32x128xbf16>, vector<8x128xf32> -> vector<8x128xf32>
    %4 = vector.broadcast %2 : vector<1x128xf32> to vector<8x128xf32>
    %5 = arith.addf %3, %4 : vector<8x128xf32>
    %cst_5 = arith.constant 0.000000e+00 : f32
    %6 = vector.broadcast %cst_5 : f32 to vector<8x128xf32>
    %7 = arith.minimumf %5, %6 : vector<8x128xf32>
    %8 = math.exp %7 : vector<8x128xf32>
    %cst_6 = arith.constant 1.000000e+00 : f32
    %9 = vector.broadcast %cst_6 : f32 to vector<8x128xf32>
    %10 = arith.subf %8, %9 : vector<8x128xf32>
    %cst_7 = arith.constant 0.000000e+00 : f32
    %11 = vector.broadcast %cst_7 : f32 to vector<8x128xf32>
    %12 = arith.cmpf ogt, %5, %11 : vector<8x128xf32>
    %13 = arith.select %12, %5, %10 : vector<8x128xi1>, vector<8x128xf32>
    %14 = arith.truncf %13 : vector<8x128xf32> to vector<8x128xbf16>
    %c0_8 = arith.constant 0 : index
    %c0_9 = arith.constant 0 : index
    %15 = vector.load %arg4[%c0_8, %c0_9] : memref<128x128xbf16, #tpu.memory_space<vmem>>, vector<128x128xbf16>
    %c0_10 = arith.constant 0 : index
    %c0_11 = arith.constant 0 : index
    %16 = vector.load %arg5[%c0_10, %c0_11] : memref<1x128xf32, #tpu.memory_space<vmem>>, vector<1x128xf32>
    %cst_12 = arith.constant dense<0.000000e+00> : vector<8x128xf32>
    %17 = tpu.matmul %14, %15, %cst_12 {dimension_numbers = #tpu.dot_dimension_numbers<[1], [0], [0], [1], [0, 0, 1, 1], [], []>} : vector<8x128xbf16>, vector<128x128xbf16>, vector<8x128xf32> -> vector<8x128xf32>
    %18 = vector.broadcast %16 : vector<1x128xf32> to vector<8x128xf32>
    %19 = arith.addf %17, %18 : vector<8x128xf32>
    %cst_13 = arith.constant 0.000000e+00 : f32
    %20 = vector.broadcast %cst_13 : f32 to vector<8x128xf32>
    %21 = arith.minimumf %19, %20 : vector<8x128xf32>
    %22 = math.exp %21 : vector<8x128xf32>
    %cst_14 = arith.constant 1.000000e+00 : f32
    %23 = vector.broadcast %cst_14 : f32 to vector<8x128xf32>
    %24 = arith.subf %22, %23 : vector<8x128xf32>
    %cst_15 = arith.constant 0.000000e+00 : f32
    %25 = vector.broadcast %cst_15 : f32 to vector<8x128xf32>
    %26 = arith.cmpf ogt, %19, %25 : vector<8x128xf32>
    %27 = arith.select %26, %19, %24 : vector<8x128xi1>, vector<8x128xf32>
    %28 = arith.truncf %27 : vector<8x128xf32> to vector<8x128xbf16>
    %c0_16 = arith.constant 0 : index
    %c0_17 = arith.constant 0 : index
    %29 = vector.load %arg6[%c0_16, %c0_17] : memref<128x128xbf16, #tpu.memory_space<vmem>>, vector<128x128xbf16>
    %c0_18 = arith.constant 0 : index
    %c0_19 = arith.constant 0 : index
    %30 = vector.load %arg7[%c0_18, %c0_19] : memref<1x128xf32, #tpu.memory_space<vmem>>, vector<1x128xf32>
    %cst_20 = arith.constant dense<0.000000e+00> : vector<8x128xf32>
    %31 = tpu.matmul %28, %29, %cst_20 {dimension_numbers = #tpu.dot_dimension_numbers<[1], [0], [0], [1], [0, 0, 1, 1], [], []>} : vector<8x128xbf16>, vector<128x128xbf16>, vector<8x128xf32> -> vector<8x128xf32>
    %32 = vector.broadcast %30 : vector<1x128xf32> to vector<8x128xf32>
    %33 = arith.addf %31, %32 : vector<8x128xf32>
    %34 = tpu.iota {dimensions = array<i32: 1>} : vector<1x128xi32>
    %c6_i32 = arith.constant 6 : i32
    %35 = vector.broadcast %c6_i32 : i32 to vector<1x128xi32>
    %36 = arith.cmpi slt, %34, %35 : vector<1x128xi32>
    %cst_21 = arith.constant -1.000000e+30 : f32
    %37 = vector.shape_cast %36 : vector<1x128xi1> to vector<1x128xi1>
    %38 = vector.broadcast %37 : vector<1x128xi1> to vector<8x128xi1>
    %39 = vector.broadcast %cst_21 : f32 to vector<8x128xf32>
    %40 = arith.select %38, %33, %39 : vector<8x128xi1>, vector<8x128xf32>
    %cst_22 = arith.constant dense<0xFF800000> : vector<8xf32>
    %41 = vector.multi_reduction <maximumf>, %40, %cst_22 [1] : vector<8x128xf32> to vector<8xf32>
    %42 = vector.shape_cast %41 : vector<8xf32> to vector<8x1xf32>
    %43 = vector.broadcast %42 : vector<8x1xf32> to vector<8x128xf32>
    %44 = arith.subf %40, %43 : vector<8x128xf32>
    %45 = math.exp %44 : vector<8x128xf32>
    %cst_23 = arith.constant 0.000000e+00 : f32
    %46 = vector.shape_cast %36 : vector<1x128xi1> to vector<1x128xi1>
    %47 = vector.broadcast %46 : vector<1x128xi1> to vector<8x128xi1>
    %48 = vector.broadcast %cst_23 : f32 to vector<8x128xf32>
    %49 = arith.select %47, %45, %48 : vector<8x128xi1>, vector<8x128xf32>
    %cst_24 = arith.constant dense<0.000000e+00> : vector<8xf32>
    %50 = vector.multi_reduction <add>, %49, %cst_24 [1] : vector<8x128xf32> to vector<8xf32>
    %51 = vector.shape_cast %50 : vector<8xf32> to vector<8x1xf32>
    %52 = math.log %51 : vector<8x1xf32>
    %53 = arith.addf %52, %42 : vector<8x1xf32>
    %54 = vector.shape_cast %36 : vector<1x128xi1> to vector<1x128xi1>
    %55 = vector.broadcast %54 : vector<1x128xi1> to vector<8x128xi1>
    %56 = vector.shape_cast %53 : vector<8x1xf32> to vector<8x1xf32>
    %57 = vector.broadcast %56 : vector<8x1xf32> to vector<8x128xf32>
    %58 = arith.select %55, %33, %57 : vector<8x128xi1>, vector<8x128xf32>
    %59 = arith.truncf %58 : vector<8x128xf32> to vector<8x128xbf16>
    %c0_25 = arith.constant 0 : index
    %c0_26 = arith.constant 0 : index
    %60 = vector.load %arg8[%c0_25, %c0_26] : memref<8x128xbf16, #tpu.memory_space<vmem>>, vector<8x128xbf16>
    tpu.vector_store %arg8[%c0_25, %c0_26], %59 {strides = array<i32>} : memref<8x128xbf16, #tpu.memory_space<vmem>>, vector<8x128xbf16>,
    return
  }
  func.func @transform_0(%arg0: i32) -> (i32, i32) {
    %c0_i32 = arith.constant 0 : i32
    %c0_i32_0 = arith.constant 0 : i32
    return %arg0, %c0_i32 : i32, i32
  }
  func.func @transform_1(%arg0: i32) -> (i32, i32) {
    %c0_i32 = arith.constant 0 : i32
    %c0_i32_0 = arith.constant 0 : i32
    %c0_i32_1 = arith.constant 0 : i32
    return %c0_i32, %c0_i32_0 : i32, i32
  }
  func.func @transform_2(%arg0: i32) -> (i32, i32) {
    %c0_i32 = arith.constant 0 : i32
    %c0_i32_0 = arith.constant 0 : i32
    %c0_i32_1 = arith.constant 0 : i32
    return %c0_i32, %c0_i32_0 : i32, i32
  }
  func.func @transform_3(%arg0: i32) -> (i32, i32) {
    %c0_i32 = arith.constant 0 : i32
    %c0_i32_0 = arith.constant 0 : i32
    %c0_i32_1 = arith.constant 0 : i32
    return %c0_i32, %c0_i32_0 : i32, i32
  }
  func.func @transform_4(%arg0: i32) -> (i32, i32) {
    %c0_i32 = arith.constant 0 : i32
    %c0_i32_0 = arith.constant 0 : i32
    %c0_i32_1 = arith.constant 0 : i32
    return %c0_i32, %c0_i32_0 : i32, i32
  }
  func.func @transform_5(%arg0: i32) -> (i32, i32) {
    %c0_i32 = arith.constant 0 : i32
    %c0_i32_0 = arith.constant 0 : i32
    %c0_i32_1 = arith.constant 0 : i32
    return %c0_i32, %c0_i32_0 : i32, i32
  }
  func.func @transform_6(%arg0: i32) -> (i32, i32) {
    %c0_i32 = arith.constant 0 : i32
    %c0_i32_0 = arith.constant 0 : i32
    %c0_i32_1 = arith.constant 0 : i32
    return %c0_i32, %c0_i32_0 : i32, i32
  }
  func.func @transform_7(%arg0: i32) -> (i32, i32) {
    %c0_i32 = arith.constant 0 : i32
    %c0_i32_0 = arith.constant 0 : i32
    return %arg0, %c0_i32 : i32, i32
  }
}

module attributes {stable_mosaic.version = 11 : i64} {
  func.func @_policy_kernel(%arg0: i32, %arg1: memref<8x32xbf16, #tpu.memory_space<vmem>>, %arg2: memref<32x128xbf16, #tpu.memory_space<vmem>>, %arg3: memref<1x128xf32, #tpu.memory_space<vmem>>, %arg4: memref<128x128xbf16, #tpu.memory_space<vmem>>, %arg5: memref<1x128xf32, #tpu.memory_space<vmem>>, %arg6: memref<128x128xbf16, #tpu.memory_space<vmem>>, %arg7: memref<1x128xf32, #tpu.memory_space<vmem>>, %arg8: memref<8x128xbf16, #tpu.memory_space<vmem>>) attributes {dimension_semantics = [#tpu.dimension_semantics<parallel>], iteration_bounds = array<i64: 1>, scalar_prefetch = 0 : i64, scratch_operands = 0 : i64, tpu.core_type = #tpu.core_type<tc>, window_params = [{transform_indices = @transform_0, window_bounds = array<i64: 8, 32>}, {pipeline_mode = #tpu.pipeline_mode<synchronous>, transform_indices = @transform_1, window_bounds = array<i64: 32, 128>}, {pipeline_mode = #tpu.pipeline_mode<synchronous>, transform_indices = @transform_2, window_bounds = array<i64: 1, 128>}, {pipeline_mode = #tpu.pipeline_mode<synchronous>, transform_indices = @transform_3, window_bounds = array<i64: 128, 128>}, {pipeline_mode = #tpu.pipeline_mode<synchronous>, transform_indices = @transform_4, window_bounds = array<i64: 1, 128>}, {pipeline_mode = #tpu.pipeline_mode<synchronous>, transform_indices = @transform_5, window_bounds = array<i64: 128, 128>}, {pipeline_mode = #tpu.pipeline_mode<synchronous>, transform_indices = @transform_6, window_bounds = array<i64: 1, 128>}, {transform_indices = @transform_7, window_bounds = array<i64: 8, 128>}]} {
    %c0 = arith.constant 0 : index
    %c0_0 = arith.constant 0 : index
    %0 = vector.load %arg1[%c0, %c0_0] : memref<8x32xbf16, #tpu.memory_space<vmem>>, vector<8x32xbf16>
    %c0_1 = arith.constant 0 : index
    %c0_2 = arith.constant 0 : index
    %1 = vector.load %arg2[%c0_1, %c0_2] : memref<32x128xbf16, #tpu.memory_space<vmem>>, vector<32x128xbf16>
    %c0_3 = arith.constant 0 : index
    %c0_4 = arith.constant 0 : index
    %2 = vector.load %arg3[%c0_3, %c0_4] : memref<1x128xf32, #tpu.memory_space<vmem>>, vector<1x128xf32>
    %cst = arith.constant dense<0.000000e+00> : vector<8x128xf32>
    %3 = tpu.matmul %0, %1, %cst {dimension_numbers = #tpu.dot_dimension_numbers<[1], [0], [0], [1], [0, 0, 1, 1], [], []>} : vector<8x32xbf16>, vector<32x128xbf16>, vector<8x128xf32> -> vector<8x128xf32>
    %4 = vector.broadcast %2 : vector<1x128xf32> to vector<8x128xf32>
    %5 = arith.addf %3, %4 : vector<8x128xf32>
    %cst_5 = arith.constant 0.000000e+00 : f32
    %6 = vector.broadcast %cst_5 : f32 to vector<8x128xf32>
    %7 = arith.minimumf %5, %6 : vector<8x128xf32>
    %8 = math.exp %7 : vector<8x128xf32>
    %cst_6 = arith.constant 1.000000e+00 : f32
    %9 = vector.broadcast %cst_6 : f32 to vector<8x128xf32>
    %10 = arith.subf %8, %9 : vector<8x128xf32>
    %cst_7 = arith.constant 0.000000e+00 : f32
    %11 = vector.broadcast %cst_7 : f32 to vector<8x128xf32>
    %12 = arith.cmpf ogt, %5, %11 : vector<8x128xf32>
    %13 = arith.select %12, %5, %10 : vector<8x128xi1>, vector<8x128xf32>
    %14 = arith.truncf %13 : vector<8x128xf32> to vector<8x128xbf16>
    %c0_8 = arith.constant 0 : index
    %c0_9 = arith.constant 0 : index
    %15 = vector.load %arg4[%c0_8, %c0_9] : memref<128x128xbf16, #tpu.memory_space<vmem>>, vector<128x128xbf16>
    %c0_10 = arith.constant 0 : index
    %c0_11 = arith.constant 0 : index
    %16 = vector.load %arg5[%c0_10, %c0_11] : memref<1x128xf32, #tpu.memory_space<vmem>>, vector<1x128xf32>
    %cst_12 = arith.constant dense<0.000000e+00> : vector<8x128xf32>
    %17 = tpu.matmul %14, %15, %cst_12 {dimension_numbers = #tpu.dot_dimension_numbers<[1], [0], [0], [1], [0, 0, 1, 1], [], []>} : vector<8x128xbf16>, vector<128x128xbf16>, vector<8x128xf32> -> vector<8x128xf32>
    %18 = vector.broadcast %16 : vector<1x128xf32> to vector<8x128xf32>
    %19 = arith.addf %17, %18 : vector<8x128xf32>
    %cst_13 = arith.constant 0.000000e+00 : f32
    %20 = vector.broadcast %cst_13 : f32 to vector<8x128xf32>
    %21 = arith.minimumf %19, %20 : vector<8x128xf32>
    %22 = math.exp %21 : vector<8x128xf32>
    %cst_14 = arith.constant 1.000000e+00 : f32
    %23 = vector.broadcast %cst_14 : f32 to vector<8x128xf32>
    %24 = arith.subf %22, %23 : vector<8x128xf32>
    %cst_15 = arith.constant 0.000000e+00 : f32
    %25 = vector.broadcast %cst_15 : f32 to vector<8x128xf32>
    %26 = arith.cmpf ogt, %19, %25 : vector<8x128xf32>
    %27 = arith.select %26, %19, %24 : vector<8x128xi1>, vector<8x128xf32>
    %28 = arith.truncf %27 : vector<8x128xf32> to vector<8x128xbf16>
    %c0_16 = arith.constant 0 : index
    %c0_17 = arith.constant 0 : index
    %29 = vector.load %arg6[%c0_16, %c0_17] : memref<128x128xbf16, #tpu.memory_space<vmem>>, vector<128x128xbf16>
    %c0_18 = arith.constant 0 : index
    %c0_19 = arith.constant 0 : index
    %30 = vector.load %arg7[%c0_18, %c0_19] : memref<1x128xf32, #tpu.memory_space<vmem>>, vector<1x128xf32>
    %cst_20 = arith.constant dense<0.000000e+00> : vector<8x128xf32>
    %31 = tpu.matmul %28, %29, %cst_20 {dimension_numbers = #tpu.dot_dimension_numbers<[1], [0], [0], [1], [0, 0, 1, 1], [], []>} : vector<8x128xbf16>, vector<128x128xbf16>, vector<8x128xf32> -> vector<8x128xf32>
    %32 = vector.broadcast %30 : vector<1x128xf32> to vector<8x128xf32>
    %33 = arith.addf %31, %32 : vector<8x128xf32>
    %34 = tpu.iota {dimensions = array<i32: 1>} : vector<1x128xi32>
    %c6_i32 = arith.constant 6 : i32
    %35 = vector.broadcast %c6_i32 : i32 to vector<1x128xi32>
    %36 = arith.cmpi slt, %34, %35 : vector<1x128xi32>
    %cst_21 = arith.constant -1.000000e+30 : f32
    %37 = vector.shape_cast %36 : vector<1x128xi1> to vector<1x128xi1>
    %38 = vector.broadcast %37 : vector<1x128xi1> to vector<8x128xi1>
    %39 = vector.broadcast %cst_21 : f32 to vector<8x128xf32>
    %40 = arith.select %38, %33, %39 : vector<8x128xi1>, vector<8x128xf32>
    %cst_22 = arith.constant dense<0xFF800000> : vector<8xf32>
    %41 = vector.multi_reduction <maximumf>, %40, %cst_22 [1] : vector<8x128xf32> to vector<8xf32>
    %42 = vector.shape_cast %41 : vector<8xf32> to vector<8x1xf32>
    %43 = vector.broadcast %42 : vector<8x1xf32> to vector<8x128xf32>
    %44 = arith.subf %40, %43 : vector<8x128xf32>
    %45 = math.exp %44 : vector<8x128xf32>
    %cst_23 = arith.constant 0.000000e+00 : f32
    %46 = vector.shape_cast %36 : vector<1x128xi1> to vector<1x128xi1>
    %47 = vector.broadcast %46 : vector<1x128xi1> to vector<8x128xi1>
    %48 = vector.broadcast %cst_23 : f32 to vector<8x128xf32>
    %49 = arith.select %47, %45, %48 : vector<8x128xi1>, vector<8x128xf32>
    %cst_24 = arith.constant dense<0.000000e+00> : vector<8xf32>
    %50 = vector.multi_reduction <add>, %49, %cst_24 [1] : vector<8x128xf32> to vector<8xf32>
    %51 = vector.shape_cast %50 : vector<8xf32> to vector<8x1xf32>
    %52 = math.log %51 : vector<8x1xf32>
    %53 = arith.addf %52, %42 : vector<8x1xf32>
    %54 = vector.shape_cast %36 : vector<1x128xi1> to vector<1x128xi1>
    %55 = vector.broadcast %54 : vector<1x128xi1> to vector<8x128xi1>
    %56 = vector.shape_cast %53 : vector<8x1xf32> to vector<8x1xf32>
    %57 = vector.broadcast %56 : vector<8x1xf32> to vector<8x128xf32>
    %58 = arith.select %55, %33, %57 : vector<8x128xi1>, vector<8x128xf32>
    %59 = arith.truncf %58 : vector<8x128xf32> to vector<8x128xbf16>
    %c0_25 = arith.constant 0 : index
    %c0_26 = arith.constant 0 : index
    %60 = vector.load %arg8[%c0_25, %c0_26] : memref<8x128xbf16, #tpu.memory_space<vmem>>, vector<8x128xbf16>
    tpu.vector_store %arg8[%c0_25, %c0_26], %59 {strides = array<i32>} : memref<8x128xbf16, #tpu.memory_space<vmem>>, vector<8x128xbf16>,
    return
  }
  func.func @transform_0(%arg0: i32) -> (i32, i32) {
    %c0_i32 = arith.constant 0 : i32
    %c0_i32_0 = arith.constant 0 : i32
    return %arg0, %c0_i32 : i32, i32
  }
  func.func @transform_1(%arg0: i32) -> (i32, i32) {
    %c0_i32 = arith.constant 0 : i32
    %c0_i32_0 = arith.constant 0 : i32
    %c0_i32_1 = arith.constant 0 : i32
    return %c0_i32, %c0_i32_0 : i32, i32
  }
  func.func @transform_2(%arg0: i32) -> (i32, i32) {
    %c0_i32 = arith.constant 0 : i32
    %c0_i32_0 = arith.constant 0 : i32
    %c0_i32_1 = arith.constant 0 : i32
    return %c0_i32, %c0_i32_0 : i32, i32
  }
  func.func @transform_3(%arg0: i32) -> (i32, i32) {
    %c0_i32 = arith.constant 0 : i32
    %c0_i32_0 = arith.constant 0 : i32
    %c0_i32_1 = arith.constant 0 : i32
    return %c0_i32, %c0_i32_0 : i32, i32
  }
  func.func @transform_4(%arg0: i32) -> (i32, i32) {
    %c0_i32 = arith.constant 0 : i32
    %c0_i32_0 = arith.constant 0 : i32
    %c0_i32_1 = arith.constant 0 : i32
    return %c0_i32, %c0_i32_0 : i32, i32
  }
  func.func @transform_5(%arg0: i32) -> (i32, i32) {
    %c0_i32 = arith.constant 0 : i32
    %c0_i32_0 = arith.constant 0 : i32
    %c0_i32_1 = arith.constant 0 : i32
    return %c0_i32, %c0_i32_0 : i32, i32
  }
  func.func @transform_6(%arg0: i32) -> (i32, i32) {
    %c0_i32 = arith.constant 0 : i32
    %c0_i32_0 = arith.constant 0 : i32
    %c0_i32_1 = arith.constant 0 : i32
    return %c0_i32, %c0_i32_0 : i32, i32
  }
  func.func @transform_7(%arg0: i32) -> (i32, i32) {
    %c0_i32 = arith.constant 0 : i32
    %c0_i32_0 = arith.constant 0 : i32
    return %arg0, %c0_i32 : i32, i32
  }
}

</mosaic_0001>

<llo_original>
// kernel: tpu_custom_call.1
$region0: #{tpu_custom_call.1}
  #allocation0 [shape = 'u32[]', space=smem, size = 0x4, offset = 0x4, fixed_abs, tag = 'smem constant byte address 0x4 - core index']
  #allocation1 [shape = 'u32[72,128]{1,0:T(1,128)}', space=vmem, size = 0x9000, scoped, tag = 'internal scratch']
  %s0 = inlined_call_operand.hbm [shape: bf16[8,32], index: 0, kind: input, shape index: {}]
  %s1 = inlined_call_operand.hbm [shape: bf16[32,128], index: 1, kind: input, shape index: {}]
  %s2 = inlined_call_operand.vmem [shape: f32[1,128], index: 2, kind: input, shape index: {}]
  %s3 = inlined_call_operand.hbm [shape: bf16[128,128], index: 3, kind: input, shape index: {}]
  %s4 = inlined_call_operand.vmem [shape: f32[1,128], index: 4, kind: input, shape index: {}]
  %s5 = inlined_call_operand.hbm [shape: bf16[128,128], index: 5, kind: input, shape index: {}]
  %s6 = inlined_call_operand.vmem [shape: f32[1,128], index: 6, kind: input, shape index: {}]
  %s7 = inlined_call_operand.hbm [shape: bf16[8,128], index: 7, kind: output, shape index: {}]
  %s8 = sld [smem:[#allocation0]]
  $region54: #{tpu_custom_call.1} parent=0
    _
  %s10 = ssub.s32 1, %s8
  %s11 = scalar_select 0, %s10, %s8
  $region1: #{tpu_custom_call.1} parent=0
    #allocation2 [shape = 'u8[2048]{0}', space=vmem, size = 0x800, scoped, tag = 'input window, operand 0, single buffered']
    #allocation3 [shape = 's32[1]{0}', space=sflag, size = 0x4, scoped, tag = 'scoped memory for tpu_custom_call.1']
    #allocation4 [shape = 's32[1]{0}', space=sflag, size = 0x4, scoped, tag = 'scoped memory for tpu_custom_call.1']
    #allocation5 [shape = 'u8[8192]{0}', space=vmem, size = 0x2000, scoped, tag = 'input window, operand 1, single buffered']
    #allocation6 [shape = 's32[1]{0}', space=sflag, size = 0x4, scoped, tag = 'scoped memory for tpu_custom_call.1']
    #allocation7 [shape = 'u8[32768]{0}', space=vmem, size = 0x8000, scoped, tag = 'input window, operand 3, single buffered']
    #allocation8 [shape = 'u8[32768]{0}', space=vmem, size = 0x8000, scoped, tag = 'input window, operand 5, single buffered']
    #allocation9 [shape = 's32[1]{0}', space=sflag, size = 0x4, scoped, tag = 'scoped memory for tpu_custom_call.1']
    #allocation10 [shape = 'u8[2048]{0}', space=vmem, size = 0x800, scoped, tag = 'output window, operand 0, single buffered']
    %12 = vsyncpa [#allocation3], 0
    %13 = vsyncpa [#allocation6], 0
    %14 = vsyncpa [#allocation9], 0
    %15 = vsyncpa [#allocation4], 0
    // Predicated region
    $region2: #{tpu_custom_call.1} parent=1 // pred_check
      _
    $region3: #{tpu_custom_call.1} parent=1 // pred_check_branch
      %17 = sbr.rel (0) target = $region5
    $region4: #{tpu_custom_call.1} parent=1 // pred_region
      %19 = vsyncadd [#allocation3], 0
      %s21 = sshll.u32 %s0, 4
      %s22 = int_to_ptr.hbm [resolvable:$true] %s21
      %s23 = sshll.u32 [#allocation2], 4
      %s24 = int_to_ptr.vmem [resolvable:$true] %s23
      %26 = dma.hbm_to_vmem [thread:$0]  %s22, 64, %s24, [#allocation3]
    $region5: #{tpu_custom_call.1} parent=1 // pred_fallthru
      _
    // Predicated region
    $region6: #{tpu_custom_call.1} parent=1 // pred_check
      _
    $region7: #{tpu_custom_call.1} parent=1 // pred_check_branch
      %28 = sbr.rel (0) target = $region9
    $region8: #{tpu_custom_call.1} parent=1 // pred_region
      %30 = vsyncadd [#allocation6], 0
      %s31 = sshll.u32 %s1, 4
      %s32 = int_to_ptr.hbm [resolvable:$true] %s31
      %s33 = sshll.u32 [#allocation5], 4
      %s34 = int_to_ptr.vmem [resolvable:$true] %s33
      %39 = dma.hbm_to_vmem [thread:$0]  %s32, 256, %s34, [#allocation6], 64, 64, 4
    $region9: #{tpu_custom_call.1} parent=1 // pred_fallthru
      _
    // Predicated region
    $region10: #{tpu_custom_call.1} parent=1 // pred_check
      _
    $region11: #{tpu_custom_call.1} parent=1 // pred_check_branch
      %41 = sbr.rel (0) target = $region13
    $region12: #{tpu_custom_call.1} parent=1 // pred_region
      _
    $region13: #{tpu_custom_call.1} parent=1 // pred_fallthru
      _
    // Predicated region
    $region14: #{tpu_custom_call.1} parent=1 // pred_check
      _
    $region15: #{tpu_custom_call.1} parent=1 // pred_check_branch
      %43 = sbr.rel (0) target = $region17
    $region16: #{tpu_custom_call.1} parent=1 // pred_region
      %45 = vsyncadd [#allocation6], 0
      %s46 = sshll.u32 %s3, 4
      %s47 = int_to_ptr.hbm [resolvable:$true] %s46
      %s48 = sshll.u32 [#allocation7], 4
      %s49 = int_to_ptr.vmem [resolvable:$true] %s48
      %54 = dma.hbm_to_vmem [thread:$0]  %s47, 1024, %s49, [#allocation6], 64, 64, 4
    $region17: #{tpu_custom_call.1} parent=1 // pred_fallthru
      _
    // Predicated region
    $region18: #{tpu_custom_call.1} parent=1 // pred_check
      _
    $region19: #{tpu_custom_call.1} parent=1 // pred_check_branch
      %56 = sbr.rel (0) target = $region21
    $region20: #{tpu_custom_call.1} parent=1 // pred_region
      _
    $region21: #{tpu_custom_call.1} parent=1 // pred_fallthru
      _
    // Predicated region
    $region22: #{tpu_custom_call.1} parent=1 // pred_check
      _
    $region23: #{tpu_custom_call.1} parent=1 // pred_check_branch
      %58 = sbr.rel (0) target = $region25
    $region24: #{tpu_custom_call.1} parent=1 // pred_region
      %60 = vsyncadd [#allocation9], 0
      %s61 = sshll.u32 %s5, 4
      %s62 = int_to_ptr.hbm [resolvable:$true] %s61
      %s63 = sshll.u32 [#allocation8], 4
      %s64 = int_to_ptr.vmem [resolvable:$true] %s63
      %69 = dma.hbm_to_vmem [thread:$0]  %s62, 1024, %s64, [#allocation9], 64, 64, 4
    $region25: #{tpu_custom_call.1} parent=1 // pred_fallthru
      _
    // Predicated region
    $region26: #{tpu_custom_call.1} parent=1 // pred_check
      _
    $region27: #{tpu_custom_call.1} parent=1 // pred_check_branch
      %71 = sbr.rel (0) target = $region29
    $region28: #{tpu_custom_call.1} parent=1 // pred_region
      _
    $region29: #{tpu_custom_call.1} parent=1 // pred_fallthru
      _
    // Predicated region
    $region30: #{tpu_custom_call.1} parent=1 // pred_check
      _
    $region31: #{tpu_custom_call.1} parent=1 // pred_check_branch
      %73 = sbr.rel (0) target = $region33
    $region32: #{tpu_custom_call.1} parent=1 // pred_region
      %75 = dma.done [#allocation3], 64
    $region33: #{tpu_custom_call.1} parent=1 // pred_fallthru
      _
    // Predicated region
    $region34: #{tpu_custom_call.1} parent=1 // pred_check
      _
    $region35: #{tpu_custom_call.1} parent=1 // pred_check_branch
      %77 = sbr.rel (0) target = $region37
    $region36: #{tpu_custom_call.1} parent=1 // pred_region
      %79 = dma.done [#allocation6], 256
    $region37: #{tpu_custom_call.1} parent=1 // pred_fallthru
      _
    // Predicated region
    $region38: #{tpu_custom_call.1} parent=1 // pred_check
      _
    $region39: #{tpu_custom_call.1} parent=1 // pred_check_branch
      %81 = sbr.rel (0) target = $region41
    $region40: #{tpu_custom_call.1} parent=1 // pred_region
      %83 = dma.done [#allocation6], 1024
    $region41: #{tpu_custom_call.1} parent=1 // pred_fallthru
      _
    // Predicated region
    $region42: #{tpu_custom_call.1} parent=1 // pred_check
      _
    $region43: #{tpu_custom_call.1} parent=1 // pred_check_branch
      %85 = sbr.rel (0) target = $region45
    $region44: #{tpu_custom_call.1} parent=1 // pred_region
      %87 = dma.done [#allocation9], 1024
    $region45: #{tpu_custom_call.1} parent=1 // pred_fallthru
      _
    %v89 = vld [vmem:[#allocation2] sm:$0xf]
    %v90 = vld [vmem:[#allocation5] sm:$0xf]
    %v91 = vld [vmem:[#allocation5 + $0x4] sm:$0xf]
    %v92 = vld [vmem:[#allocation5 + $0x8] sm:$0xf]
    %v93 = vld [vmem:[#allocation5 + $0xc] sm:$0xf]
    %v94 = vld [vmem:[%s2] sm:$0x1]
    %v96 = vperm.slane %v94, 0
    %v102 = vunpack.c.l.b16 %v90
    %v103 = vunpack.c.l.b16 %v91
    %v104 = vunpack.c.l.b16 %v92
    %v105 = vunpack.c.l.b16 %v93
    %v106 = vpack.c.b16 %v103, %v102
    %v107 = vpack.c.b16 %v105, %v104
    %vm110 = vcmask 261120
    %v112 = vsel %vm110, %v89, 0
    %114 = vmatpush.bf16.msra.mxu0 0
    %115 = vmatpush.bf16.msra.mxu0 0
    %116 = vmatpush.bf16.msra.mxu0 0
    %117 = vmatpush.bf16.msra.mxu0 0
    %118 = vmatpush.bf16.msra.mxu0 0
    %119 = vmatpush.bf16.msra.mxu0 0
    %120 = vmatpush.bf16.msra.mxu0 %v107
    %121 = vmatpush.bf16.msra.mxu0 %v106
    %122 = vmatmul.bf16.gmra.mxu0 %v112
    %v123 = vpop.f32.mrf.mxu0
    %v124 = vadd.f32 %v96, %v123
    %v125 = vpop.f32.mrf.mxu0
    %126 = vdwg.mxu0
    %v127 = vmin.f32 %v124, 0.0
    %v128 = vmul.f32 %v127, 1.442695
    %v129 = vpow.pop %v128
    %v130 = vsub.f32 %v129, 1.0
    %vm131 = vcmp.gt.f32.partialorder %v124, 0.0
    %v132 = vsel %vm131, %v124, %v130
    %v133 = vpack.c.bf16 %v132, %v132
    %v134 = vld [vmem:[#allocation7] sm:$0xf]
    %v135 = vld [vmem:[#allocation7 + $0x4] sm:$0xf]
    %v136 = vld [vmem:[#allocation7 + $0x8] sm:$0xf]
    %v137 = vld [vmem:[#allocation7 + $0xc] sm:$0xf]
    %v138 = vld [vmem:[#allocation7 + $0x10] sm:$0xf]
    %v139 = vld [vmem:[#allocation7 + $0x14] sm:$0xf]
    %v140 = vld [vmem:[#allocation7 + $0x18] sm:$0xf]
    %v141 = vld [vmem:[#allocation7 + $0x1c] sm:$0xf]
    %v142 = vld [vmem:[#allocation7 + $0x20] sm:$0xf]
    %v143 = vld [vmem:[#allocation7 + $0x24] sm:$0xf]
    %v144 = vld [vmem:[#allocation7 + $0x28] sm:$0xf]
    %v145 = vld [vmem:[#allocation7 + $0x2c] sm:$0xf]
    %v146 = vld [vmem:[#allocation7 + $0x30] sm:$0xf]
    %v147 = vld [vmem:[#allocation7 + $0x34] sm:$0xf]
    %v148 = vld [vmem:[#allocation7 + $0x38] sm:$0xf]
    %v149 = vld [vmem:[#allocation7 + $0x3c] sm:$0xf]
    %v150 = vld [vmem:[%s4] sm:$0x1]
    %v152 = vperm.slane %v150, 0
    %v170 = vunpack.c.l.b16 %v134
    %v171 = vunpack.c.l.b16 %v135
    %v172 = vunpack.c.l.b16 %v136
    %v173 = vunpack.c.l.b16 %v137
    %v174 = vunpack.c.l.b16 %v138
    %v175 = vunpack.c.l.b16 %v139
    %v176 = vunpack.c.l.b16 %v140
    %v177 = vunpack.c.l.b16 %v141
    %v178 = vunpack.c.l.b16 %v142
    %v179 = vunpack.c.l.b16 %v143
    %v180 = vunpack.c.l.b16 %v144
    %v181 = vunpack.c.l.b16 %v145
    %v182 = vunpack.c.l.b16 %v146
    %v183 = vunpack.c.l.b16 %v147
    %v184 = vunpack.c.l.b16 %v148
    %v185 = vunpack.c.l.b16 %v149
    %v186 = vpack.c.b16 %v171, %v170
    %v187 = vpack.c.b16 %v173, %v172
    %v188 = vpack.c.b16 %v175, %v174
    %v189 = vpack.c.b16 %v177, %v176
    %v190 = vpack.c.b16 %v179, %v178
    %v191 = vpack.c.b16 %v181, %v180
    %v192 = vpack.c.b16 %v183, %v182
    %v193 = vpack.c.b16 %v185, %v184
    %202 = vmatpush.bf16.msra.mxu0 %v193
    %203 = vmatpush.bf16.msra.mxu0 %v192
    %204 = vmatpush.bf16.msra.mxu0 %v191
    %205 = vmatpush.bf16.msra.mxu0 %v190
    %206 = vmatpush.bf16.msra.mxu0 %v189
    %207 = vmatpush.bf16.msra.mxu0 %v188
    %208 = vmatpush.bf16.msra.mxu0 %v187
    %209 = vmatpush.bf16.msra.mxu0 %v186
    %210 = vmatmul.bf16.gmra.mxu0 %v133
    %v211 = vpop.f32.mrf.mxu0
    %v212 = vadd.f32 %v152, %v211
    %v213 = vpop.f32.mrf.mxu0
    %214 = vdwg.mxu0
    %v215 = vmin.f32 %v212, 0.0
    %v216 = vmul.f32 %v215, 1.442695
    %v217 = vpow.pop %v216
    %v218 = vsub.f32 %v217, 1.0
    %vm219 = vcmp.gt.f32.partialorder %v212, 0.0
    %v220 = vsel %vm219, %v212, %v218
    %v221 = vpack.c.bf16 %v220, %v220
    %v222 = vld [vmem:[#allocation8] sm:$0xf]
    %v223 = vld [vmem:[#allocation8 + $0x4] sm:$0xf]
    %v224 = vld [vmem:[#allocation8 + $0x8] sm:$0xf]
    %v225 = vld [vmem:[#allocation8 + $0xc] sm:$0xf]
    %v226 = vld [vmem:[#allocation8 + $0x10] sm:$0xf]
    %v227 = vld [vmem:[#allocation8 + $0x14] sm:$0xf]
    %v228 = vld [vmem:[#allocation8 + $0x18] sm:$0xf]
    %v229 = vld [vmem:[#allocation8 + $0x1c] sm:$0xf]
    %v230 = vld [vmem:[#allocation8 + $0x20] sm:$0xf]
    %v231 = vld [vmem:[#allocation8 + $0x24] sm:$0xf]
    %v232 = vld [vmem:[#allocation8 + $0x28] sm:$0xf]
    %v233 = vld [vmem:[#allocation8 + $0x2c] sm:$0xf]
    %v234 = vld [vmem:[#allocation8 + $0x30] sm:$0xf]
    %v235 = vld [vmem:[#allocation8 + $0x34] sm:$0xf]
    %v236 = vld [vmem:[#allocation8 + $0x38] sm:$0xf]
    %v237 = vld [vmem:[#allocation8 + $0x3c] sm:$0xf]
    %v238 = vld [vmem:[%s6] sm:$0x1]
    %v240 = vperm.slane %v238, 0
    %v258 = vunpack.c.l.b16 %v222
    %v259 = vunpack.c.l.b16 %v223
    %v260 = vunpack.c.l.b16 %v224
    %v261 = vunpack.c.l.b16 %v225
    %v262 = vunpack.c.l.b16 %v226
    %v263 = vunpack.c.l.b16 %v227
    %v264 = vunpack.c.l.b16 %v228
    %v265 = vunpack.c.l.b16 %v229
    %v266 = vunpack.c.l.b16 %v230
    %v267 = vunpack.c.l.b16 %v231
    %v268 = vunpack.c.l.b16 %v232
    %v269 = vunpack.c.l.b16 %v233
    %v270 = vunpack.c.l.b16 %v234
    %v271 = vunpack.c.l.b16 %v235
    %v272 = vunpack.c.l.b16 %v236
    %v273 = vunpack.c.l.b16 %v237
    %v274 = vpack.c.b16 %v259, %v258
    %v275 = vpack.c.b16 %v261, %v260
    %v276 = vpack.c.b16 %v263, %v262
    %v277 = vpack.c.b16 %v265, %v264
    %v278 = vpack.c.b16 %v267, %v266
    %v279 = vpack.c.b16 %v269, %v268
    %v280 = vpack.c.b16 %v271, %v270
    %v281 = vpack.c.b16 %v273, %v272
    %290 = vmatpush.bf16.msra.mxu0 %v281
    %291 = vmatpush.bf16.msra.mxu0 %v280
    %292 = vmatpush.bf16.msra.mxu0 %v279
    %293 = vmatpush.bf16.msra.mxu0 %v278
    %294 = vmatpush.bf16.msra.mxu0 %v277
    %295 = vmatpush.bf16.msra.mxu0 %v276
    %296 = vmatpush.bf16.msra.mxu0 %v275
    %297 = vmatpush.bf16.msra.mxu0 %v274
    %298 = vmatmul.bf16.gmra.mxu0 %v221
    %v299 = vpop.f32.mrf.mxu0
    %v300 = vadd.f32 %v240, %v299
    %v301 = vpop.f32.mrf.mxu0
    %302 = vdwg.mxu0
    %v303 = vlaneseq
    %v304 = vand.u32 %v303, 127
    %vm305 = vcmp.lt.s32.totalorder %v304, 6
    %v306 = vsel %vm305, 1, 0
    %vm307 = vcmp.eq.s32.totalorder %v306, 1
    %v308 = vsel %vm307, %v300, -1e+30
    %309 = vmax.xlane.f32.xlu0 %v308
    %v310 = vpop.xlane.xlu0 %309
    %v311 = vsub.f32 %v308, %v310
    %v312 = vmul.f32 %v311, 1.442695
    %v313 = vpow.pop %v312
    %v314 = vsel %vm307, %v313, 0.0
    %315 = vadd.xlane.f32.xlu0 %v314
    %v316 = vpop.xlane.xlu0 %315
    %v317 = vlog2.pop %v316
    %v318 = vmul.f32 %v317, 0.6931472
    %v319 = vadd.f32 %v318, %v310
    %v320 = vsel %vm307, %v300, %v319
    %v321 = vpack.c.bf16 %v320, %v320
    %322 = vst [vmem:[#allocation10] sm:$0xf] %v321
    // Predicated region
    $region46: #{tpu_custom_call.1} parent=1 // pred_check
      _
    $region47: #{tpu_custom_call.1} parent=1 // pred_check_branch
      %324 = sbr.rel (0) target = $region49
    $region48: #{tpu_custom_call.1} parent=1 // pred_region
      %326 = vsyncadd [#allocation4], 0
      %s328 = sshll.u32 [#allocation10], 4
      %s329 = int_to_ptr.vmem [resolvable:$true] %s328
      %s330 = sshll.u32 %s7, 4
      %s331 = int_to_ptr.hbm [resolvable:$true] %s330
      %333 = dma.vmem_to_hbm [thread:$0]  %s329, 64, %s331, [#allocation4]
    $region49: #{tpu_custom_call.1} parent=1 // pred_fallthru
      _
    // Predicated region
    $region50: #{tpu_custom_call.1} parent=1 // pred_check
      _
    $region51: #{tpu_custom_call.1} parent=1 // pred_check_branch
      %335 = sbr.rel (0) target = $region53
    $region52: #{tpu_custom_call.1} parent=1 // pred_region
      %337 = dma.done [#allocation4], 64
    $region53: #{tpu_custom_call.1} parent=1 // pred_fallthru
      _
    %338 = vsyncpa [#allocation3], 1
    %339 = vsyncpa [#allocation6], 1
    %340 = vsyncpa [#allocation9], 1
    %341 = vsyncpa [#allocation4], 1

// kernel: tpu_custom_call.1
$region0: #{tpu_custom_call.1}
  #allocation0 [shape = 'u32[]', space=smem, size = 0x4, offset = 0x4, fixed_abs, tag = 'smem constant byte address 0x4 - core index']
  #allocation1 [shape = 'u32[72,128]{1,0:T(1,128)}', space=vmem, size = 0x9000, scoped, tag = 'internal scratch']
  %s0 = inlined_call_operand.hbm [shape: bf16[8,32], index: 0, kind: input, shape index: {}]
  %s1 = inlined_call_operand.hbm [shape: bf16[32,128], index: 1, kind: input, shape index: {}]
  %s2 = inlined_call_operand.vmem [shape: f32[1,128], index: 2, kind: input, shape index: {}]
  %s3 = inlined_call_operand.hbm [shape: bf16[128,128], index: 3, kind: input, shape index: {}]
  %s4 = inlined_call_operand.vmem [shape: f32[1,128], index: 4, kind: input, shape index: {}]
  %s5 = inlined_call_operand.hbm [shape: bf16[128,128], index: 5, kind: input, shape index: {}]
  %s6 = inlined_call_operand.vmem [shape: f32[1,128], index: 6, kind: input, shape index: {}]
  %s7 = inlined_call_operand.hbm [shape: bf16[8,128], index: 7, kind: output, shape index: {}]
  %s8 = sld [smem:[#allocation0]]
  $region54: #{tpu_custom_call.1} parent=0
    _
  %s10 = ssub.s32 1, %s8
  %s11 = scalar_select 0, %s10, %s8
  $region1: #{tpu_custom_call.1} parent=0
    #allocation2 [shape = 'u8[2048]{0}', space=vmem, size = 0x800, scoped, tag = 'input window, operand 0, single buffered']
    #allocation3 [shape = 's32[1]{0}', space=sflag, size = 0x4, scoped, tag = 'scoped memory for tpu_custom_call.1']
    #allocation4 [shape = 's32[1]{0}', space=sflag, size = 0x4, scoped, tag = 'scoped memory for tpu_custom_call.1']
    #allocation5 [shape = 'u8[8192]{0}', space=vmem, size = 0x2000, scoped, tag = 'input window, operand 1, single buffered']
    #allocation6 [shape = 's32[1]{0}', space=sflag, size = 0x4, scoped, tag = 'scoped memory for tpu_custom_call.1']
    #allocation7 [shape = 'u8[32768]{0}', space=vmem, size = 0x8000, scoped, tag = 'input window, operand 3, single buffered']
    #allocation8 [shape = 'u8[32768]{0}', space=vmem, size = 0x8000, scoped, tag = 'input window, operand 5, single buffered']
    #allocation9 [shape = 's32[1]{0}', space=sflag, size = 0x4, scoped, tag = 'scoped memory for tpu_custom_call.1']
    #allocation10 [shape = 'u8[2048]{0}', space=vmem, size = 0x800, scoped, tag = 'output window, operand 0, single buffered']
    %12 = vsyncpa [#allocation3], 0
    %13 = vsyncpa [#allocation6], 0
    %14 = vsyncpa [#allocation9], 0
    %15 = vsyncpa [#allocation4], 0
    // Predicated region
    $region2: #{tpu_custom_call.1} parent=1 // pred_check
      _
    $region3: #{tpu_custom_call.1} parent=1 // pred_check_branch
      %17 = sbr.rel (0) target = $region5
    $region4: #{tpu_custom_call.1} parent=1 // pred_region
      %19 = vsyncadd [#allocation3], 0
      %s21 = sshll.u32 %s0, 4
      %s22 = int_to_ptr.hbm [resolvable:$true] %s21
      %s23 = sshll.u32 [#allocation2], 4
      %s24 = int_to_ptr.vmem [resolvable:$true] %s23
      %26 = dma.hbm_to_vmem [thread:$0]  %s22, 64, %s24, [#allocation3]
    $region5: #{tpu_custom_call.1} parent=1 // pred_fallthru
      _
    // Predicated region
    $region6: #{tpu_custom_call.1} parent=1 // pred_check
      _
    $region7: #{tpu_custom_call.1} parent=1 // pred_check_branch
      %28 = sbr.rel (0) target = $region9
    $region8: #{tpu_custom_call.1} parent=1 // pred_region
      %30 = vsyncadd [#allocation6], 0
      %s31 = sshll.u32 %s1, 4
      %s32 = int_to_ptr.hbm [resolvable:$true] %s31
      %s33 = sshll.u32 [#allocation5], 4
      %s34 = int_to_ptr.vmem [resolvable:$true] %s33
      %39 = dma.hbm_to_vmem [thread:$0]  %s32, 256, %s34, [#allocation6], 64, 64, 4
    $region9: #{tpu_custom_call.1} parent=1 // pred_fallthru
      _
    // Predicated region
    $region10: #{tpu_custom_call.1} parent=1 // pred_check
      _
    $region11: #{tpu_custom_call.1} parent=1 // pred_check_branch
      %41 = sbr.rel (0) target = $region13
    $region12: #{tpu_custom_call.1} parent=1 // pred_region
      _
    $region13: #{tpu_custom_call.1} parent=1 // pred_fallthru
      _
    // Predicated region
    $region14: #{tpu_custom_call.1} parent=1 // pred_check
      _
    $region15: #{tpu_custom_call.1} parent=1 // pred_check_branch
      %43 = sbr.rel (0) target = $region17
    $region16: #{tpu_custom_call.1} parent=1 // pred_region
      %45 = vsyncadd [#allocation6], 0
      %s46 = sshll.u32 %s3, 4
      %s47 = int_to_ptr.hbm [resolvable:$true] %s46
      %s48 = sshll.u32 [#allocation7], 4
      %s49 = int_to_ptr.vmem [resolvable:$true] %s48
      %54 = dma.hbm_to_vmem [thread:$0]  %s47, 1024, %s49, [#allocation6], 64, 64, 4
    $region17: #{tpu_custom_call.1} parent=1 // pred_fallthru
      _
    // Predicated region
    $region18: #{tpu_custom_call.1} parent=1 // pred_check
      _
    $region19: #{tpu_custom_call.1} parent=1 // pred_check_branch
      %56 = sbr.rel (0) target = $region21
    $region20: #{tpu_custom_call.1} parent=1 // pred_region
      _
    $region21: #{tpu_custom_call.1} parent=1 // pred_fallthru
      _
    // Predicated region
    $region22: #{tpu_custom_call.1} parent=1 // pred_check
      _
    $region23: #{tpu_custom_call.1} parent=1 // pred_check_branch
      %58 = sbr.rel (0) target = $region25
    $region24: #{tpu_custom_call.1} parent=1 // pred_region
      %60 = vsyncadd [#allocation9], 0
      %s61 = sshll.u32 %s5, 4
      %s62 = int_to_ptr.hbm [resolvable:$true] %s61
      %s63 = sshll.u32 [#allocation8], 4
      %s64 = int_to_ptr.vmem [resolvable:$true] %s63
      %69 = dma.hbm_to_vmem [thread:$0]  %s62, 1024, %s64, [#allocation9], 64, 64, 4
    $region25: #{tpu_custom_call.1} parent=1 // pred_fallthru
      _
    // Predicated region
    $region26: #{tpu_custom_call.1} parent=1 // pred_check
      _
    $region27: #{tpu_custom_call.1} parent=1 // pred_check_branch
      %71 = sbr.rel (0) target = $region29
    $region28: #{tpu_custom_call.1} parent=1 // pred_region
      _
    $region29: #{tpu_custom_call.1} parent=1 // pred_fallthru
      _
    // Predicated region
    $region30: #{tpu_custom_call.1} parent=1 // pred_check
      _
    $region31: #{tpu_custom_call.1} parent=1 // pred_check_branch
      %73 = sbr.rel (0) target = $region33
    $region32: #{tpu_custom_call.1} parent=1 // pred_region
      %75 = dma.done [#allocation3], 64
    $region33: #{tpu_custom_call.1} parent=1 // pred_fallthru
      _
    // Predicated region
    $region34: #{tpu_custom_call.1} parent=1 // pred_check
      _
    $region35: #{tpu_custom_call.1} parent=1 // pred_check_branch
      %77 = sbr.rel (0) target = $region37
    $region36: #{tpu_custom_call.1} parent=1 // pred_region
      %79 = dma.done [#allocation6], 256
    $region37: #{tpu_custom_call.1} parent=1 // pred_fallthru
      _
    // Predicated region
    $region38: #{tpu_custom_call.1} parent=1 // pred_check
      _
    $region39: #{tpu_custom_call.1} parent=1 // pred_check_branch
      %81 = sbr.rel (0) target = $region41
    $region40: #{tpu_custom_call.1} parent=1 // pred_region
      %83 = dma.done [#allocation6], 1024
    $region41: #{tpu_custom_call.1} parent=1 // pred_fallthru
      _
    // Predicated region
    $region42: #{tpu_custom_call.1} parent=1 // pred_check
      _
    $region43: #{tpu_custom_call.1} parent=1 // pred_check_branch
      %85 = sbr.rel (0) target = $region45
    $region44: #{tpu_custom_call.1} parent=1 // pred_region
      %87 = dma.done [#allocation9], 1024
    $region45: #{tpu_custom_call.1} parent=1 // pred_fallthru
      _
    %v89 = vld [vmem:[#allocation2] sm:$0xf]
    %v90 = vld [vmem:[#allocation5] sm:$0xf]
    %v91 = vld [vmem:[#allocation5 + $0x4] sm:$0xf]
    %v92 = vld [vmem:[#allocation5 + $0x8] sm:$0xf]
    %v93 = vld [vmem:[#allocation5 + $0xc] sm:$0xf]
    %v94 = vld [vmem:[%s2] sm:$0x1]
    %v96 = vperm.slane %v94, 0
    %v102 = vunpack.c.l.b16 %v90
    %v103 = vunpack.c.l.b16 %v91
    %v104 = vunpack.c.l.b16 %v92
    %v105 = vunpack.c.l.b16 %v93
    %v106 = vpack.c.b16 %v103, %v102
    %v107 = vpack.c.b16 %v105, %v104
    %vm110 = vcmask 261120
    %v112 = vsel %vm110, %v89, 0
    %114 = vmatpush.bf16.msra.mxu0 0
    %115 = vmatpush.bf16.msra.mxu0 0
    %116 = vmatpush.bf16.msra.mxu0 0
    %117 = vmatpush.bf16.msra.mxu0 0
    %118 = vmatpush.bf16.msra.mxu0 0
    %119 = vmatpush.bf16.msra.mxu0 0
    %120 = vmatpush.bf16.msra.mxu0 %v107
    %121 = vmatpush.bf16.msra.mxu0 %v106
    %122 = vmatmul.bf16.gmra.mxu0 %v112
    %v123 = vpop.f32.mrf.mxu0
    %v124 = vadd.f32 %v96, %v123
    %v125 = vpop.f32.mrf.mxu0
    %126 = vdwg.mxu0
    %v127 = vmin.f32 %v124, 0.0
    %v128 = vmul.f32 %v127, 1.442695
    %v129 = vpow.pop %v128
    %v130 = vsub.f32 %v129, 1.0
    %vm131 = vcmp.gt.f32.partialorder %v124, 0.0
    %v132 = vsel %vm131, %v124, %v130
    %v133 = vpack.c.bf16 %v132, %v132
    %v134 = vld [vmem:[#allocation7] sm:$0xf]
    %v135 = vld [vmem:[#allocation7 + $0x4] sm:$0xf]
    %v136 = vld [vmem:[#allocation7 + $0x8] sm:$0xf]
    %v137 = vld [vmem:[#allocation7 + $0xc] sm:$0xf]
    %v138 = vld [vmem:[#allocation7 + $0x10] sm:$0xf]
    %v139 = vld [vmem:[#allocation7 + $0x14] sm:$0xf]
    %v140 = vld [vmem:[#allocation7 + $0x18] sm:$0xf]
    %v141 = vld [vmem:[#allocation7 + $0x1c] sm:$0xf]
    %v142 = vld [vmem:[#allocation7 + $0x20] sm:$0xf]
    %v143 = vld [vmem:[#allocation7 + $0x24] sm:$0xf]
    %v144 = vld [vmem:[#allocation7 + $0x28] sm:$0xf]
    %v145 = vld [vmem:[#allocation7 + $0x2c] sm:$0xf]
    %v146 = vld [vmem:[#allocation7 + $0x30] sm:$0xf]
    %v147 = vld [vmem:[#allocation7 + $0x34] sm:$0xf]
    %v148 = vld [vmem:[#allocation7 + $0x38] sm:$0xf]
    %v149 = vld [vmem:[#allocation7 + $0x3c] sm:$0xf]
    %v150 = vld [vmem:[%s4] sm:$0x1]
    %v152 = vperm.slane %v150, 0
    %v170 = vunpack.c.l.b16 %v134
    %v171 = vunpack.c.l.b16 %v135
    %v172 = vunpack.c.l.b16 %v136
    %v173 = vunpack.c.l.b16 %v137
    %v174 = vunpack.c.l.b16 %v138
    %v175 = vunpack.c.l.b16 %v139
    %v176 = vunpack.c.l.b16 %v140
    %v177 = vunpack.c.l.b16 %v141
    %v178 = vunpack.c.l.b16 %v142
    %v179 = vunpack.c.l.b16 %v143
    %v180 = vunpack.c.l.b16 %v144
    %v181 = vunpack.c.l.b16 %v145
    %v182 = vunpack.c.l.b16 %v146
    %v183 = vunpack.c.l.b16 %v147
    %v184 = vunpack.c.l.b16 %v148
    %v185 = vunpack.c.l.b16 %v149
    %v186 = vpack.c.b16 %v171, %v170
    %v187 = vpack.c.b16 %v173, %v172
    %v188 = vpack.c.b16 %v175, %v174
    %v189 = vpack.c.b16 %v177, %v176
    %v190 = vpack.c.b16 %v179, %v178
    %v191 = vpack.c.b16 %v181, %v180
    %v192 = vpack.c.b16 %v183, %v182
    %v193 = vpack.c.b16 %v185, %v184
    %202 = vmatpush.bf16.msra.mxu0 %v193
    %203 = vmatpush.bf16.msra.mxu0 %v192
    %204 = vmatpush.bf16.msra.mxu0 %v191
    %205 = vmatpush.bf16.msra.mxu0 %v190
    %206 = vmatpush.bf16.msra.mxu0 %v189
    %207 = vmatpush.bf16.msra.mxu0 %v188
    %208 = vmatpush.bf16.msra.mxu0 %v187
    %209 = vmatpush.bf16.msra.mxu0 %v186
    %210 = vmatmul.bf16.gmra.mxu0 %v133
    %v211 = vpop.f32.mrf.mxu0
    %v212 = vadd.f32 %v152, %v211
    %v213 = vpop.f32.mrf.mxu0
    %214 = vdwg.mxu0
    %v215 = vmin.f32 %v212, 0.0
    %v216 = vmul.f32 %v215, 1.442695
    %v217 = vpow.pop %v216
    %v218 = vsub.f32 %v217, 1.0
    %vm219 = vcmp.gt.f32.partialorder %v212, 0.0
    %v220 = vsel %vm219, %v212, %v218
    %v221 = vpack.c.bf16 %v220, %v220
    %v222 = vld [vmem:[#allocation8] sm:$0xf]
    %v223 = vld [vmem:[#allocation8 + $0x4] sm:$0xf]
    %v224 = vld [vmem:[#allocation8 + $0x8] sm:$0xf]
    %v225 = vld [vmem:[#allocation8 + $0xc] sm:$0xf]
    %v226 = vld [vmem:[#allocation8 + $0x10] sm:$0xf]
    %v227 = vld [vmem:[#allocation8 + $0x14] sm:$0xf]
    %v228 = vld [vmem:[#allocation8 + $0x18] sm:$0xf]
    %v229 = vld [vmem:[#allocation8 + $0x1c] sm:$0xf]
    %v230 = vld [vmem:[#allocation8 + $0x20] sm:$0xf]
    %v231 = vld [vmem:[#allocation8 + $0x24] sm:$0xf]
    %v232 = vld [vmem:[#allocation8 + $0x28] sm:$0xf]
    %v233 = vld [vmem:[#allocation8 + $0x2c] sm:$0xf]
    %v234 = vld [vmem:[#allocation8 + $0x30] sm:$0xf]
    %v235 = vld [vmem:[#allocation8 + $0x34] sm:$0xf]
    %v236 = vld [vmem:[#allocation8 + $0x38] sm:$0xf]
    %v237 = vld [vmem:[#allocation8 + $0x3c] sm:$0xf]
    %v238 = vld [vmem:[%s6] sm:$0x1]
    %v240 = vperm.slane %v238, 0
    %v258 = vunpack.c.l.b16 %v222
    %v259 = vunpack.c.l.b16 %v223
    %v260 = vunpack.c.l.b16 %v224
    %v261 = vunpack.c.l.b16 %v225
    %v262 = vunpack.c.l.b16 %v226
    %v263 = vunpack.c.l.b16 %v227
    %v264 = vunpack.c.l.b16 %v228
    %v265 = vunpack.c.l.b16 %v229
    %v266 = vunpack.c.l.b16 %v230
    %v267 = vunpack.c.l.b16 %v231
    %v268 = vunpack.c.l.b16 %v232
    %v269 = vunpack.c.l.b16 %v233
    %v270 = vunpack.c.l.b16 %v234
    %v271 = vunpack.c.l.b16 %v235
    %v272 = vunpack.c.l.b16 %v236
    %v273 = vunpack.c.l.b16 %v237
    %v274 = vpack.c.b16 %v259, %v258
    %v275 = vpack.c.b16 %v261, %v260
    %v276 = vpack.c.b16 %v263, %v262
    %v277 = vpack.c.b16 %v265, %v264
    %v278 = vpack.c.b16 %v267, %v266
    %v279 = vpack.c.b16 %v269, %v268
    %v280 = vpack.c.b16 %v271, %v270
    %v281 = vpack.c.b16 %v273, %v272
    %290 = vmatpush.bf16.msra.mxu0 %v281
    %291 = vmatpush.bf16.msra.mxu0 %v280
    %292 = vmatpush.bf16.msra.mxu0 %v279
    %293 = vmatpush.bf16.msra.mxu0 %v278
    %294 = vmatpush.bf16.msra.mxu0 %v277
    %295 = vmatpush.bf16.msra.mxu0 %v276
    %296 = vmatpush.bf16.msra.mxu0 %v275
    %297 = vmatpush.bf16.msra.mxu0 %v274
    %298 = vmatmul.bf16.gmra.mxu0 %v221
    %v299 = vpop.f32.mrf.mxu0
    %v300 = vadd.f32 %v240, %v299
    %v301 = vpop.f32.mrf.mxu0
    %302 = vdwg.mxu0
    %v303 = vlaneseq
    %v304 = vand.u32 %v303, 127
    %vm305 = vcmp.lt.s32.totalorder %v304, 6
    %v306 = vsel %vm305, 1, 0
    %vm307 = vcmp.eq.s32.totalorder %v306, 1
    %v308 = vsel %vm307, %v300, -1e+30
    %309 = vmax.xlane.f32.xlu0 %v308
    %v310 = vpop.xlane.xlu0 %309
    %v311 = vsub.f32 %v308, %v310
    %v312 = vmul.f32 %v311, 1.442695
    %v313 = vpow.pop %v312
    %v314 = vsel %vm307, %v313, 0.0
    %315 = vadd.xlane.f32.xlu0 %v314
    %v316 = vpop.xlane.xlu0 %315
    %v317 = vlog2.pop %v316
    %v318 = vmul.f32 %v317, 0.6931472
    %v319 = vadd.f32 %v318, %v310
    %v320 = vsel %vm307, %v300, %v319
    %v321 = vpack.c.bf16 %v320, %v320
    %322 = vst [vmem:[#allocation10] sm:$0xf] %v321
    // Predicated region
    $region46: #{tpu_custom_call.1} parent=1 // pred_check
      _
    $region47: #{tpu_custom_call.1} parent=1 // pred_check_branch
      %324 = sbr.rel (0) target = $region49
    $region48: #{tpu_custom_call.1} parent=1 // pred_region
      %326 = vsyncadd [#allocation4], 0
      %s328 = sshll.u32 [#allocation10], 4
      %s329 = int_to_ptr.vmem [resolvable:$true] %s328
      %s330 = sshll.u32 %s7, 4
      %s331 = int_to_ptr.hbm [resolvable:$true] %s330
      %333 = dma.vmem_to_hbm [thread:$0]  %s329, 64, %s331, [#allocation4]
    $region49: #{tpu_custom_call.1} parent=1 // pred_fallthru
      _
    // Predicated region
    $region50: #{tpu_custom_call.1} parent=1 // pred_check
      _
    $region51: #{tpu_custom_call.1} parent=1 // pred_check_branch
      %335 = sbr.rel (0) target = $region53
    $region52: #{tpu_custom_call.1} parent=1 // pred_region
      %337 = dma.done [#allocation4], 64
    $region53: #{tpu_custom_call.1} parent=1 // pred_fallthru
      _
    %338 = vsyncpa [#allocation3], 1
    %339 = vsyncpa [#allocation6], 1
    %340 = vsyncpa [#allocation9], 1
    %341 = vsyncpa [#allocation4], 1

</llo_original>
